<compile_context>
chip_gen: v7x
topology: tpu7x:2x2x1
jax: 0.10.0
libtpu: 0.0.40
codegen_flags: <defaults>
</compile_context>

<pallas_src>
import functools
import math

import jax
import jax.numpy as jnp
from jax import lax
from jax.experimental import pallas as pl
from jax.experimental.pallas import tpu as pltpu


# --------------------------------------------------------------------------- #
# Kernels
# --------------------------------------------------------------------------- #
def _projection_kernel(q_ref, k_ref, v_ref,
                       wq_ref, bq_ref, wk_ref, bk_ref, wv_ref, bv_ref,
                       qp_ref, kp_ref, vp_ref, *, scale):
    """One (batch, seq-tile) step: qp = (q@Wq+bq)*scale, kp = k@Wk+bk, vp=...

    x refs: (1, TS, Dm); weights: (Dm, Dh); biases: (1, Dh);
    outputs: (1, TS, Dh) in proj dtype (f32 or bf16).  Accumulation is f32.
    """
    def proj(x_ref, w_ref, b_ref):
        return (jnp.dot(x_ref[0], w_ref[...],
                        preferred_element_type=jnp.float32)
                + b_ref[...])

    qp_ref[0] = (proj(q_ref, wq_ref, bq_ref) * scale).astype(qp_ref.dtype)
    kp_ref[0] = proj(k_ref, wk_ref, bk_ref).astype(kp_ref.dtype)
    vp_ref[0] = proj(v_ref, wv_ref, bv_ref).astype(vp_ref.dtype)


def _attention_kernel(qp_ref, kp_ref, vp_ref, att_ref, out_ref, *,
                      mxu_dtype, approx_recip):
    """One (batch, q-tile) step.

    qp_ref : (1, TQ, Dh)  scaled, projected q tile
    kp_ref : (1, S,  Dh)  projected K for this batch element
    vp_ref : (1, S,  Dh)  projected V for this batch element
    att_ref: (1, TQ, S)   softmax(q k^T / sqrt(Dh)) tile
    out_ref: (1, TQ, Dh)  att @ vp tile
    """
    qp = qp_ref[0]                                           # (TQ, Dh)
    kp = kp_ref[0]                                           # (S,  Dh)
    vp = vp_ref[0]                                           # (S,  Dh)

    # Contract head dim directly (A @ B^T on the MXU, no materialized kp^T).
    scores = lax.dot_general(qp, kp,
                             dimension_numbers=(((1,), (1,)), ((), ())),
                             preferred_element_type=jnp.float32)  # (TQ, S)

    m = jnp.max(scores, axis=-1, keepdims=True)
    x = scores - m

    if mxu_dtype is None:
        # Exact-ish f32 path (parity with the PyTorch module).
        e = jnp.exp(x)
        denom = jnp.sum(e, axis=-1, keepdims=True)
        att = e * pl.reciprocal(denom, approx=approx_recip)
    else:
        # bf16 exp (EUP bf16 on v6e/v7x), f32 row-sum, approx reciprocal,
        # probabilities kept in bf16 for the att @ vp MXU matmul.
        e = jnp.exp(x.astype(mxu_dtype))
        denom = jnp.sum(e.astype(jnp.float32), axis=-1, keepdims=True)
        att = e * pl.reciprocal(denom, approx=True).astype(mxu_dtype)

    att_ref[0] = att.astype(att_ref.dtype)
    out_ref[0] = jnp.dot(att, vp,
                         preferred_element_type=jnp.float32).astype(out_ref.dtype)


# --------------------------------------------------------------------------- #
# Tile / VMEM planning
# --------------------------------------------------------------------------- #
def _vmem_budget_bytes(fraction=0.75):
    """~75% of this generation's physical VMEM (96 MiB v5e/v6e, 48 MiB v7x)."""
    cap = None
    try:
        cap = getattr(pltpu.get_tpu_info(), "vmem_capacity_bytes", None)
    except Exception:
        cap = None
    if not cap:
        cap = 64 << 20  # conservative fallback: v7x per-TensorCore VMEM
    return int(cap * fraction)


def _divisor_tiles(S, cap=2048):
    """Divisors of S (<= cap), lane-aligned first, then sublane-aligned."""
    divs = sorted({d for d in range(1, min(S, cap) + 1) if S % d == 0},
                  reverse=True)
    lane = [d for d in divs if d % 128 == 0]
    sub = [d for d in divs if d % 8 == 0 and d % 128 != 0]
    rest = [d for d in divs if d % 8 != 0]
    tiles = lane + sub + rest
    return tiles if tiles else [S]


def _pick_proj_tile(S, Dm, Dh, in_bytes, proj_bytes, budget):
    tiles = _divisor_tiles(S)
    persistent = 3 * Dm * Dh * in_bytes + 3 * Dh * 4          # weights + biases
    for ts in tiles:
        streamed = 2 * 3 * ts * (Dm * in_bytes + Dh * proj_bytes)  # dbl-buffered
        if streamed + persistent <= budget:
            return ts
    return tiles[-1]


def _pick_q_tile(S, Dh, proj_bytes, att_bytes, out_bytes, budget):
    tiles = _divisor_tiles(S)
    resident_kv = 2 * 2 * S * Dh * proj_bytes                 # kp, vp (2 bufs)
    for tq in tiles:
        streamed = 2 * tq * (Dh * proj_bytes + S * att_bytes + Dh * out_bytes)
        if streamed + resident_kv <= budget:
            return tq
    return tiles[-1]


# --------------------------------------------------------------------------- #
# Wrapper
# --------------------------------------------------------------------------- #
def attention_pallas(q, k, v, wq, bq, wk, bk, wv, bv, head_dim, *,
                     mxu_dtype=None, att_dtype=None, approx_softmax=False,
                     vmem_fraction=0.75):
    """Returns (att, out) matching the PyTorch Attention.forward semantics.

    mxu_dtype=jnp.bfloat16 runs MXU operands / exp in bf16 (f32 accumulation).
    att_dtype can be set to bf16 to halve the dominant (B,S,S) HBM writeback.
    """
    B, S, Dm = q.shape
    Dh = head_dim
    scale = 1.0 / math.sqrt(Dh)

    out_dtype = q.dtype
    proj_dtype = jnp.float32 if mxu_dtype is None else jnp.dtype(mxu_dtype)
    att_out_dtype = jnp.float32 if att_dtype is None else jnp.dtype(att_dtype)

    budget = _vmem_budget_bytes(vmem_fraction)

    # Cast once in the wrapper (never per grid step inside the kernel).
    if mxu_dtype is not None:
        q, k, v = (x.astype(mxu_dtype) for x in (q, k, v))
        wq, wk, wv = (w.astype(mxu_dtype) for w in (wq, wk, wv))

    in_bytes = jnp.dtype(q.dtype).itemsize
    proj_bytes = jnp.dtype(proj_dtype).itemsize
    att_bytes = jnp.dtype(att_out_dtype).itemsize
    out_bytes = jnp.dtype(out_dtype).itemsize

    # ---- 1) Q/K/V projections (separate pallas_call) ----------------------
    ts = _pick_proj_tile(S, Dm, Dh, in_bytes, proj_bytes, budget)
    n_s = S // ts

    x_spec = pl.BlockSpec((1, ts, Dm), lambda b, i: (b, i, 0))
    w_spec = pl.BlockSpec((Dm, Dh), lambda b, i: (0, 0))
    b_spec = pl.BlockSpec((1, Dh), lambda b, i: (0, 0))
    p_spec = pl.BlockSpec((1, ts, Dh), lambda b, i: (b, i, 0))

    qp, kp, vp = pl.pallas_call(
        functools.partial(_projection_kernel, scale=scale),
        grid=(B, n_s),
        in_specs=[x_spec, x_spec, x_spec,
                  w_spec, b_spec, w_spec, b_spec, w_spec, b_spec],
        out_specs=[p_spec, p_spec, p_spec],
        out_shape=[jax.ShapeDtypeStruct((B, S, Dh), proj_dtype)] * 3,
        compiler_params=pltpu.CompilerParams(
            dimension_semantics=("parallel", "parallel"),
            vmem_limit_bytes=budget),
    )(q, k, v, wq, bq, wk, bk, wv, bv)

    # ---- 2) softmax(qp kp^T) and att @ vp, tiled over the q axis ----------
    tq = _pick_q_tile(S, Dh, proj_bytes, att_bytes, out_bytes, budget)
    n_q = S // tq

    att, out = pl.pallas_call(
        functools.partial(
            _attention_kernel,
            mxu_dtype=None if mxu_dtype is None else jnp.dtype(mxu_dtype),
            approx_recip=approx_softmax),
        grid=(B, n_q),
        in_specs=[pl.BlockSpec((1, tq, Dh), lambda b, i: (b, i, 0)),
                  pl.BlockSpec((1, S, Dh), lambda b, i: (b, 0, 0)),
                  pl.BlockSpec((1, S, Dh), lambda b, i: (b, 0, 0))],
        out_specs=[pl.BlockSpec((1, tq, S), lambda b, i: (b, i, 0)),
                   pl.BlockSpec((1, tq, Dh), lambda b, i: (b, i, 0))],
        out_shape=[jax.ShapeDtypeStruct((B, S, S), att_out_dtype),
                   jax.ShapeDtypeStruct((B, S, Dh), out_dtype)],
        compiler_params=pltpu.CompilerParams(
            dimension_semantics=("parallel", "parallel"),
            vmem_limit_bytes=budget),
    )(qp, kp, vp)

    return att, out


# --------------------------------------------------------------------------- #
# Pure-JAX reference and self-test
# --------------------------------------------------------------------------- #
def attention_reference(q, k, v, wq, bq, wk, bk, wv, bv, head_dim):
    qp = q @ wq + bq
    kp = k @ wk + bk
    vp = v @ wv + bv
    scores = jnp.einsum("bij,bkj->bik", qp, kp) / jnp.sqrt(jnp.float32(head_dim))
    att = jax.nn.softmax(scores, axis=-1)
    out = jnp.einsum("bij,bjk->bik", att, vp)
    return att, out


def _make_inputs(key, B, S, Dm, Dh):
    ks = jax.random.split(key, 9)
    q = jax.random.normal(ks[0], (B, S, Dm), jnp.float32)
    k = jax.random.normal(ks[1], (B, S, Dm), jnp.float32)
    v = jax.random.normal(ks[2], (B, S, Dm), jnp.float32)
    # nn.Linear(model_dim, head_dim) params, stored transposed: W [Dm, Dh].
    lim = 1.0 / math.sqrt(Dm)
    wq = jax.random.uniform(ks[3], (Dm, Dh), jnp.float32, -lim, lim)
    bq = jax.random.uniform(ks[4], (1, Dh), jnp.float32, -lim, lim)
    wk = jax.random.uniform(ks[5], (Dm, Dh), jnp.float32, -lim, lim)
    bk = jax.random.uniform(ks[6], (1, Dh), jnp.float32, -lim, lim)
    wv = jax.random.uniform(ks[7], (Dm, Dh), jnp.float32, -lim, lim)
    bv = jax.random.uniform(ks[8], (1, Dh), jnp.float32, -lim, lim)
    return q, k, v, wq, bq, wk, bk, wv, bv


if __name__ == "__main__":
    key = jax.random.PRNGKey(0)
    k_small, k_big = jax.random.split(key)

    # ---- Small shape consistent with the module (model_dim=32, head_dim=16).
    B, S, Dm, Dh = 2, 8, 32, 16
    args = _make_inputs(k_small, B, S, Dm, Dh)
    att_ref_, out_ref_ = attention_reference(*args, Dh)

    att, out = attention_pallas(*args, Dh)
    jax.block_until_ready((att, out))
    assert jnp.allclose(att, att_ref_, atol=1e-5, rtol=1e-5)
    assert jnp.allclose(out, out_ref_, atol=1e-5, rtol=1e-5)

    # ---- Reduced-precision MXU path (bf16 operands / exp, f32 accumulation).
    att_bf, out_bf = attention_pallas(*args, Dh, mxu_dtype=jnp.bfloat16)
    jax.block_until_ready((att_bf, out_bf))
    assert jnp.allclose(att_bf, att_ref_, atol=1e-1, rtol=1e-1)
    assert jnp.allclose(out_bf, out_ref_, atol=1e-1, rtol=1e-1)

    # ---- Lane-aligned shape exercising (8,128) tiling and the q-tile picker.
    B2, S2, Dm2, Dh2 = 2, 256, 128, 64
    args2 = _make_inputs(k_big, B2, S2, Dm2, Dh2)
    att_ref2, out_ref2 = attention_reference(*args2, Dh2)
    att2, out2 = attention_pallas(*args2, Dh2)
    jax.block_until_ready((att2, out2))
    assert jnp.allclose(att2, att_ref2, atol=1e-3, rtol=1e-3)
    assert jnp.allclose(out2, out_ref2, atol=1e-3, rtol=1e-3)

    print("KERNEL_OK")
</pallas_src>

<mosaic_0001>
module attributes {stable_mosaic.version = 11 : i64} {
  func.func @_projection_kernel(%arg0: i32, %arg1: i32, %arg2: memref<1x8x32xf32, #tpu.memory_space<vmem>>, %arg3: memref<1x8x32xf32, #tpu.memory_space<vmem>>, %arg4: memref<1x8x32xf32, #tpu.memory_space<vmem>>, %arg5: memref<32x16xf32, #tpu.memory_space<vmem>>, %arg6: memref<1x16xf32, #tpu.memory_space<vmem>>, %arg7: memref<32x16xf32, #tpu.memory_space<vmem>>, %arg8: memref<1x16xf32, #tpu.memory_space<vmem>>, %arg9: memref<32x16xf32, #tpu.memory_space<vmem>>, %arg10: memref<1x16xf32, #tpu.memory_space<vmem>>, %arg11: memref<1x8x16xf32, #tpu.memory_space<vmem>>, %arg12: memref<1x8x16xf32, #tpu.memory_space<vmem>>, %arg13: memref<1x8x16xf32, #tpu.memory_space<vmem>>) attributes {dimension_semantics = [#tpu.dimension_semantics<parallel>, #tpu.dimension_semantics<parallel>], iteration_bounds = array<i64: 2, 1>, scalar_prefetch = 0 : i64, scratch_operands = 0 : i64, tpu.core_type = #tpu.core_type<tc>, window_params = [{transform_indices = @transform_0, window_bounds = array<i64: 1, 8, 32>}, {transform_indices = @transform_1, window_bounds = array<i64: 1, 8, 32>}, {transform_indices = @transform_2, window_bounds = array<i64: 1, 8, 32>}, {pipeline_mode = #tpu.pipeline_mode<synchronous>, transform_indices = @transform_3, window_bounds = array<i64: 32, 16>}, {pipeline_mode = #tpu.pipeline_mode<synchronous>, transform_indices = @transform_4, window_bounds = array<i64: 1, 16>}, {pipeline_mode = #tpu.pipeline_mode<synchronous>, transform_indices = @transform_5, window_bounds = array<i64: 32, 16>}, {pipeline_mode = #tpu.pipeline_mode<synchronous>, transform_indices = @transform_6, window_bounds = array<i64: 1, 16>}, {pipeline_mode = #tpu.pipeline_mode<synchronous>, transform_indices = @transform_7, window_bounds = array<i64: 32, 16>}, {pipeline_mode = #tpu.pipeline_mode<synchronous>, transform_indices = @transform_8, window_bounds = array<i64: 1, 16>}, {transform_indices = @transform_9, window_bounds = array<i64: 1, 8, 16>}, {transform_indices = @transform_10, window_bounds = array<i64: 1, 8, 16>}, {transform_indices = @transform_11, window_bounds = array<i64: 1, 8, 16>}]} {
    %c0 = arith.constant 0 : index
    %c0_0 = arith.constant 0 : index
    %c0_1 = arith.constant 0 : index
    %0 = vector.load %arg2[%c0, %c0_0, %c0_1] : memref<1x8x32xf32, #tpu.memory_space<vmem>>, vector<1x8x32xf32>
    %1 = vector.shape_cast %0 : vector<1x8x32xf32> to vector<8x32xf32>
    %c0_2 = arith.constant 0 : index
    %c0_3 = arith.constant 0 : index
    %2 = vector.load %arg5[%c0_2, %c0_3] : memref<32x16xf32, #tpu.memory_space<vmem>>, vector<32x16xf32>
    %cst = arith.constant dense<0.000000e+00> : vector<8x16xf32>
    %3 = tpu.matmul %1, %2, %cst {dimension_numbers = #tpu.dot_dimension_numbers<[1], [0], [0], [1], [0, 0, 1, 1], [], []>} : vector<8x32xf32>, vector<32x16xf32>, vector<8x16xf32> -> vector<8x16xf32>
    %c0_4 = arith.constant 0 : index
    %c0_5 = arith.constant 0 : index
    %4 = vector.load %arg6[%c0_4, %c0_5] : memref<1x16xf32, #tpu.memory_space<vmem>>, vector<1x16xf32>
    %5 = vector.broadcast %4 : vector<1x16xf32> to vector<8x16xf32>
    %6 = arith.addf %3, %5 : vector<8x16xf32>
    %cst_6 = arith.constant 2.500000e-01 : f32
    %7 = vector.broadcast %cst_6 : f32 to vector<8x16xf32>
    %8 = arith.mulf %6, %7 : vector<8x16xf32>
    %c0_7 = arith.constant 0 : index
    %c0_8 = arith.constant 0 : index
    %c0_9 = arith.constant 0 : index
    %9 = vector.load %arg11[%c0_7, %c0_8, %c0_9] : memref<1x8x16xf32, #tpu.memory_space<vmem>>, vector<1x8x16xf32>
    %10 = vector.shape_cast %9 : vector<1x8x16xf32> to vector<8x16xf32>
    %11 = vector.shape_cast %8 : vector<8x16xf32> to vector<1x8x16xf32>
    tpu.vector_store %arg11[%c0_7, %c0_8, %c0_9], %11 {strides = array<i32>} : memref<1x8x16xf32, #tpu.memory_space<vmem>>, vector<1x8x16xf32>,
    %c0_10 = arith.constant 0 : index
    %c0_11 = arith.constant 0 : index
    %c0_12 = arith.constant 0 : index
    %12 = vector.load %arg3[%c0_10, %c0_11, %c0_12] : memref<1x8x32xf32, #tpu.memory_space<vmem>>, vector<1x8x32xf32>
    %13 = vector.shape_cast %12 : vector<1x8x32xf32> to vector<8x32xf32>
    %c0_13 = arith.constant 0 : index
    %c0_14 = arith.constant 0 : index
    %14 = vector.load %arg7[%c0_13, %c0_14] : memref<32x16xf32, #tpu.memory_space<vmem>>, vector<32x16xf32>
    %cst_15 = arith.constant dense<0.000000e+00> : vector<8x16xf32>
    %15 = tpu.matmul %13, %14, %cst_15 {dimension_numbers = #tpu.dot_dimension_numbers<[1], [0], [0], [1], [0, 0, 1, 1], [], []>} : vector<8x32xf32>, vector<32x16xf32>, vector<8x16xf32> -> vector<8x16xf32>
    %c0_16 = arith.constant 0 : index
    %c0_17 = arith.constant 0 : index
    %16 = vector.load %arg8[%c0_16, %c0_17] : memref<1x16xf32, #tpu.memory_space<vmem>>, vector<1x16xf32>
    %17 = vector.broadcast %16 : vector<1x16xf32> to vector<8x16xf32>
    %18 = arith.addf %15, %17 : vector<8x16xf32>
    %c0_18 = arith.constant 0 : index
    %c0_19 = arith.constant 0 : index
    %c0_20 = arith.constant 0 : index
    %19 = vector.load %arg12[%c0_18, %c0_19, %c0_20] : memref<1x8x16xf32, #tpu.memory_space<vmem>>, vector<1x8x16xf32>
    %20 = vector.shape_cast %19 : vector<1x8x16xf32> to vector<8x16xf32>
    %21 = vector.shape_cast %18 : vector<8x16xf32> to vector<1x8x16xf32>
    tpu.vector_store %arg12[%c0_18, %c0_19, %c0_20], %21 {strides = array<i32>} : memref<1x8x16xf32, #tpu.memory_space<vmem>>, vector<1x8x16xf32>,
    %c0_21 = arith.constant 0 : index
    %c0_22 = arith.constant 0 : index
    %c0_23 = arith.constant 0 : index
    %22 = vector.load %arg4[%c0_21, %c0_22, %c0_23] : memref<1x8x32xf32, #tpu.memory_space<vmem>>, vector<1x8x32xf32>
    %23 = vector.shape_cast %22 : vector<1x8x32xf32> to vector<8x32xf32>
    %c0_24 = arith.constant 0 : index
    %c0_25 = arith.constant 0 : index
    %24 = vector.load %arg9[%c0_24, %c0_25] : memref<32x16xf32, #tpu.memory_space<vmem>>, vector<32x16xf32>
    %cst_26 = arith.constant dense<0.000000e+00> : vector<8x16xf32>
    %25 = tpu.matmul %23, %24, %cst_26 {dimension_numbers = #tpu.dot_dimension_numbers<[1], [0], [0], [1], [0, 0, 1, 1], [], []>} : vector<8x32xf32>, vector<32x16xf32>, vector<8x16xf32> -> vector<8x16xf32>
    %c0_27 = arith.constant 0 : index
    %c0_28 = arith.constant 0 : index
    %26 = vector.load %arg10[%c0_27, %c0_28] : memref<1x16xf32, #tpu.memory_space<vmem>>, vector<1x16xf32>
    %27 = vector.broadcast %26 : vector<1x16xf32> to vector<8x16xf32>
    %28 = arith.addf %25, %27 : vector<8x16xf32>
    %c0_29 = arith.constant 0 : index
    %c0_30 = arith.constant 0 : index
    %c0_31 = arith.constant 0 : index
    %29 = vector.load %arg13[%c0_29, %c0_30, %c0_31] : memref<1x8x16xf32, #tpu.memory_space<vmem>>, vector<1x8x16xf32>
    %30 = vector.shape_cast %29 : vector<1x8x16xf32> to vector<8x16xf32>
    %31 = vector.shape_cast %28 : vector<8x16xf32> to vector<1x8x16xf32>
    tpu.vector_store %arg13[%c0_29, %c0_30, %c0_31], %31 {strides = array<i32>} : memref<1x8x16xf32, #tpu.memory_space<vmem>>, vector<1x8x16xf32>,
    return
  }
  func.func @transform_0(%arg0: i32, %arg1: i32) -> (i32, i32, i32) {
    %c0_i32 = arith.constant 0 : i32
    %c0_i32_0 = arith.constant 0 : i32
    return %arg0, %arg1, %c0_i32 : i32, i32, i32
  }
  func.func @transform_1(%arg0: i32, %arg1: i32) -> (i32, i32, i32) {
    %c0_i32 = arith.constant 0 : i32
    %c0_i32_0 = arith.constant 0 : i32
    return %arg0, %arg1, %c0_i32 : i32, i32, i32
  }
  func.func @transform_2(%arg0: i32, %arg1: i32) -> (i32, i32, i32) {
    %c0_i32 = arith.constant 0 : i32
    %c0_i32_0 = arith.constant 0 : i32
    return %arg0, %arg1, %c0_i32 : i32, i32, i32
  }
  func.func @transform_3(%arg0: i32, %arg1: i32) -> (i32, i32) {
    %c0_i32 = arith.constant 0 : i32
    %c0_i32_0 = arith.constant 0 : i32
    %c0_i32_1 = arith.constant 0 : i32
    return %c0_i32, %c0_i32_0 : i32, i32
  }
  func.func @transform_4(%arg0: i32, %arg1: i32) -> (i32, i32) {
    %c0_i32 = arith.constant 0 : i32
    %c0_i32_0 = arith.constant 0 : i32
    %c0_i32_1 = arith.constant 0 : i32
    return %c0_i32, %c0_i32_0 : i32, i32
  }
  func.func @transform_5(%arg0: i32, %arg1: i32) -> (i32, i32) {
    %c0_i32 = arith.constant 0 : i32
    %c0_i32_0 = arith.constant 0 : i32
    %c0_i32_1 = arith.constant 0 : i32
    return %c0_i32, %c0_i32_0 : i32, i32
  }
  func.func @transform_6(%arg0: i32, %arg1: i32) -> (i32, i32) {
    %c0_i32 = arith.constant 0 : i32
    %c0_i32_0 = arith.constant 0 : i32
    %c0_i32_1 = arith.constant 0 : i32
    return %c0_i32, %c0_i32_0 : i32, i32
  }
  func.func @transform_7(%arg0: i32, %arg1: i32) -> (i32, i32) {
    %c0_i32 = arith.constant 0 : i32
    %c0_i32_0 = arith.constant 0 : i32
    %c0_i32_1 = arith.constant 0 : i32
    return %c0_i32, %c0_i32_0 : i32, i32
  }
  func.func @transform_8(%arg0: i32, %arg1: i32) -> (i32, i32) {
    %c0_i32 = arith.constant 0 : i32
    %c0_i32_0 = arith.constant 0 : i32
    %c0_i32_1 = arith.constant 0 : i32
    return %c0_i32, %c0_i32_0 : i32, i32
  }
  func.func @transform_9(%arg0: i32, %arg1: i32) -> (i32, i32, i32) {
    %c0_i32 = arith.constant 0 : i32
    %c0_i32_0 = arith.constant 0 : i32
    return %arg0, %arg1, %c0_i32 : i32, i32, i32
  }
  func.func @transform_10(%arg0: i32, %arg1: i32) -> (i32, i32, i32) {
    %c0_i32 = arith.constant 0 : i32
    %c0_i32_0 = arith.constant 0 : i32
    return %arg0, %arg1, %c0_i32 : i32, i32, i32
  }
  func.func @transform_11(%arg0: i32, %arg1: i32) -> (i32, i32, i32) {
    %c0_i32 = arith.constant 0 : i32
    %c0_i32_0 = arith.constant 0 : i32
    return %arg0, %arg1, %c0_i32 : i32, i32, i32
  }
}

</mosaic_0001>

<llo_original>
// kernel: tpu_custom_call.1
$region0: #{tpu_custom_call.1}
  #allocation0 [shape = 'u32[]', space=smem, size = 0x4, offset = 0x4, fixed_abs, tag = 'smem constant byte address 0x4 - core index']
  #allocation1 [shape = 'u32[144,128]{1,0:T(1,128)}', space=vmem, size = 0x12000, scoped, tag = 'internal scratch']
  %s0 = inlined_call_operand.vmem [shape: f32[2,8,32], index: 0, kind: input, shape index: {}]
  %s1 = inlined_call_operand.vmem [shape: f32[2,8,32], index: 1, kind: input, shape index: {}]
  %s2 = inlined_call_operand.vmem [shape: f32[2,8,32], index: 2, kind: input, shape index: {}]
  %s3 = inlined_call_operand.vmem [shape: f32[32,16], index: 3, kind: input, shape index: {}]
  %s4 = inlined_call_operand.vmem [shape: f32[1,16], index: 4, kind: input, shape index: {}]
  %s5 = inlined_call_operand.vmem [shape: f32[32,16], index: 5, kind: input, shape index: {}]
  %s6 = inlined_call_operand.vmem [shape: f32[1,16], index: 6, kind: input, shape index: {}]
  %s7 = inlined_call_operand.vmem [shape: f32[32,16], index: 7, kind: input, shape index: {}]
  %s8 = inlined_call_operand.vmem [shape: f32[1,16], index: 8, kind: input, shape index: {}]
  %s9 = inlined_call_operand.hbm [shape: f32[2,8,16], index: 9, kind: output, shape index: {0}]
  %s10 = inlined_call_operand.hbm [shape: f32[2,8,16], index: 10, kind: output, shape index: {1}]
  %s11 = inlined_call_operand.hbm [shape: f32[2,8,16], index: 11, kind: output, shape index: {2}]
  %12 = xla_tuple %s9, %s10, %s11
  %s13 = sld [smem:[#allocation0]]
  $region85: #{tpu_custom_call.1} parent=0
    _
  %s15 = ssub.s32 1, %s13
  %s16 = scalar_select 0, %s15, %s13
  $region1: #{tpu_custom_call.1} parent=0
    #allocation2 [shape = 'u8[8192]{0}', space=vmem, size = 0x2000, scoped, tag = 'output window, operand 0']
    #allocation3 [shape = 's32[2]{0}', space=sflag, size = 0x8, scoped, tag = 'scoped memory for tpu_custom_call.1']
    #allocation4 [shape = 'u8[8192]{0}', space=vmem, size = 0x2000, scoped, tag = 'output window, operand 1']
    #allocation5 [shape = 's32[2]{0}', space=sflag, size = 0x8, scoped, tag = 'scoped memory for tpu_custom_call.1']
    #allocation6 [shape = 'u8[8192]{0}', space=vmem, size = 0x2000, scoped, tag = 'output window, operand 2']
    %17 = vsyncpa [#allocation3], 0
    %s18 = scalar_lea.sflag [#allocation3], 1
    %19 = vsyncpa %s18, 0
    %20 = vsyncpa [#allocation5], 0
    %s21 = scalar_lea.sflag [#allocation5], 1
    %22 = vsyncpa %s21, 0
    loop: start=0, step=1, limit=4
    $region2: #{tpu_custom_call.1} parent=1 // loop_pre_header
      _
    $region3: #{tpu_custom_call.1} parent=1 // loop_header
      %s24 = sphi 0, %s28
      %p25 = scmp.ge.s32.totalorder %s24, 4
      %s31 = sphi 0, %s43
      %s32 = sphi 0, %s39
      %s33 = sphi 0, %s31
      %s34 = sphi 0, %s32
      %s35 = sphi 0, %s33
      %s36 = sphi 0, %s34
      %s48 = sphi 0, %s50
      %s51 = sphi 0, %s48
      %s52 = sphi 0, %s51
      %s68 = sphi 0, %s52
      %s76 = sphi 0, %s78
      %s79 = sphi 0, %s76
      %s80 = sphi 0, %s79
      %s96 = sphi 0, %s80
      %s104 = sphi 0, %s106
      %s107 = sphi 0, %s104
      %s108 = sphi 0, %s107
      %s124 = sphi 0, %s108
      %s128 = sphi 0, %s128
      %s130 = sphi 0, %s128
      %s131 = sphi 0, %s130
      %s145 = sphi 0, %s131
      %s149 = sphi 0, %s149
      %s151 = sphi 0, %s149
      %s152 = sphi 0, %s151
      %s166 = sphi 0, %s152
      %s170 = sphi 0, %s170
      %s172 = sphi 0, %s170
      %s173 = sphi 0, %s172
      %s187 = sphi 0, %s173
      %s191 = sphi 0, %s191
      %s193 = sphi 0, %s191
      %s194 = sphi 0, %s193
      %s208 = sphi 0, %s194
      %s212 = sphi 0, %s212
      %s214 = sphi 0, %s212
      %s215 = sphi 0, %s214
      %s229 = sphi 0, %s215
      %s233 = sphi 0, %s233
      %s235 = sphi 0, %s233
      %s236 = sphi 0, %s235
      %s250 = sphi 0, %s236
      %s258 = sphi 0, %s260
      %s261 = sphi 0, %s258
      %s262 = sphi 0, %s261
      %s278 = sphi 0, %s262
      %s286 = sphi 0, %s288
      %s289 = sphi 0, %s286
      %s290 = sphi 0, %s289
      %s306 = sphi 0, %s290
      %s314 = sphi 0, %s316
      %s317 = sphi 0, %s314
      %s318 = sphi 0, %s317
      %s334 = sphi 0, %s318
    $region4: #{tpu_custom_call.1} parent=1 // loop_header_branch
      %27 = sbr.rel (%p25) target = $region8
    $region5: #{tpu_custom_call.1} parent=1 // loop_body
      %s29 = ssub.s32 %s24, 1
      %s30 = ssub.s32 %s24, 2
      %s37 = sadd.s32 1, %s32
      %p38 = scmp.ge.s32.totalorder %s37, 1
      %s39 = scalar_select %p38, 0, %s37
      %s40 = sadd.s32 1, %s31
      %s41 = scalar_select %p38, %s40, %s31
      %p42 = scmp.ge.s32.totalorder %s41, 2
      %s43 = scalar_select %p42, 0, %s41
      %s44 = ssub.s32 %s31, %s43
      %s45 = ssub.s32 %s32, %s39
      %s46 = sor.u32 %s44, %s45
      %p47 = scmp.eq.s32.totalorder %s46, 0
      %s49 = sadd.s32 %s48, 1
      %s50 = scalar_select %p47, %s48, %s49
      %p53 = pneg %p47
      %p54 = scmp.eq.s32.totalorder %s24, 1
      %p55 = por %p53, %p54
      %p56 = scmp.ne.s32.totalorder %s48, %s51
      %p57 = scmp.eq.s32.totalorder %s24, 0
      %p58 = por %p56, %p57
      %p59 = scmp.ne.s32.totalorder %s48, %s51
      %p60 = scmp.eq.s32.totalorder %s29, 1
      %p61 = por %p59, %p60
      %p62 = scmp.ne.s32.totalorder %s51, %s52
      %p63 = scmp.eq.s32.totalorder %s29, 0
      %p64 = por %p62, %p63
      %p65 = scmp.ne.s32.totalorder %s51, %s52
      %p66 = scmp.eq.s32.totalorder %s30, 1
      %p67 = por %p65, %p66
      %p69 = scmp.ne.s32.totalorder %s52, %s68
      %p70 = scmp.eq.s32.totalorder %s30, 0
      %p71 = por %p69, %p70
      %s72 = ssub.s32 %s31, %s43
      %s73 = ssub.s32 %s32, %s39
      %s74 = sor.u32 %s72, %s73
      %p75 = scmp.eq.s32.totalorder %s74, 0
      %s77 = sadd.s32 %s76, 1
      %s78 = scalar_select %p75, %s76, %s77
      %p81 = pneg %p75
      %p82 = scmp.eq.s32.totalorder %s24, 1
      %p83 = por %p81, %p82
      %p84 = scmp.ne.s32.totalorder %s76, %s79
      %p85 = scmp.eq.s32.totalorder %s24, 0
      %p86 = por %p84, %p85
      %p87 = scmp.ne.s32.totalorder %s76, %s79
      %p88 = scmp.eq.s32.totalorder %s29, 1
      %p89 = por %p87, %p88
      %p90 = scmp.ne.s32.totalorder %s79, %s80
      %p91 = scmp.eq.s32.totalorder %s29, 0
      %p92 = por %p90, %p91
      %p93 = scmp.ne.s32.totalorder %s79, %s80
      %p94 = scmp.eq.s32.totalorder %s30, 1
      %p95 = por %p93, %p94
      %p97 = scmp.ne.s32.totalorder %s80, %s96
      %p98 = scmp.eq.s32.totalorder %s30, 0
      %p99 = por %p97, %p98
      %s100 = ssub.s32 %s31, %s43
      %s101 = ssub.s32 %s32, %s39
      %s102 = sor.u32 %s100, %s101
      %p103 = scmp.eq.s32.totalorder %s102, 0
      %s105 = sadd.s32 %s104, 1
      %s106 = scalar_select %p103, %s104, %s105
      %p109 = pneg %p103
      %p110 = scmp.eq.s32.totalorder %s24, 1
      %p111 = por %p109, %p110
      %p112 = scmp.ne.s32.totalorder %s104, %s107
      %p113 = scmp.eq.s32.totalorder %s24, 0
      %p114 = por %p112, %p113
      %p115 = scmp.ne.s32.totalorder %s104, %s107
      %p116 = scmp.eq.s32.totalorder %s29, 1
      %p117 = por %p115, %p116
      %p118 = scmp.ne.s32.totalorder %s107, %s108
      %p119 = scmp.eq.s32.totalorder %s29, 0
      %p120 = por %p118, %p119
      %p121 = scmp.ne.s32.totalorder %s107, %s108
      %p122 = scmp.eq.s32.totalorder %s30, 1
      %p123 = por %p121, %p122
      %p125 = scmp.ne.s32.totalorder %s108, %s124
      %p126 = scmp.eq.s32.totalorder %s30, 0
      %p127 = por %p125, %p126
      %s129 = sadd.s32 %s128, 1
      %p132 = scmp.eq.s32.totalorder %s24, 1
      %p133 = scmp.ne.s32.totalorder %s128, %s130
      %p134 = scmp.eq.s32.totalorder %s24, 0
      %p135 = por %p133, %p134
      %p136 = scmp.ne.s32.totalorder %s128, %s130
      %p137 = scmp.eq.s32.totalorder %s29, 1
      %p138 = por %p136, %p137
      %p139 = scmp.ne.s32.totalorder %s130, %s131
      %p140 = scmp.eq.s32.totalorder %s29, 0
      %p141 = por %p139, %p140
      %p142 = scmp.ne.s32.totalorder %s130, %s131
      %p143 = scmp.eq.s32.totalorder %s30, 1
      %p144 = por %p142, %p143
      %p146 = scmp.ne.s32.totalorder %s131, %s145
      %p147 = scmp.eq.s32.totalorder %s30, 0
      %p148 = por %p146, %p147
      %s150 = sadd.s32 %s149, 1
      %p153 = scmp.eq.s32.totalorder %s24, 1
      %p154 = scmp.ne.s32.totalorder %s149, %s151
      %p155 = scmp.eq.s32.totalorder %s24, 0
      %p156 = por %p154, %p155
      %p157 = scmp.ne.s32.totalorder %s149, %s151
      %p158 = scmp.eq.s32.totalorder %s29, 1
      %p159 = por %p157, %p158
      %p160 = scmp.ne.s32.totalorder %s151, %s152
      %p161 = scmp.eq.s32.totalorder %s29, 0
      %p162 = por %p160, %p161
      %p163 = scmp.ne.s32.totalorder %s151, %s152
      %p164 = scmp.eq.s32.totalorder %s30, 1
      %p165 = por %p163, %p164
      %p167 = scmp.ne.s32.totalorder %s152, %s166
      %p168 = scmp.eq.s32.totalorder %s30, 0
      %p169 = por %p167, %p168
      %s171 = sadd.s32 %s170, 1
      %p174 = scmp.eq.s32.totalorder %s24, 1
      %p175 = scmp.ne.s32.totalorder %s170, %s172
      %p176 = scmp.eq.s32.totalorder %s24, 0
      %p177 = por %p175, %p176
      %p178 = scmp.ne.s32.totalorder %s170, %s172
      %p179 = scmp.eq.s32.totalorder %s29, 1
      %p180 = por %p178, %p179
      %p181 = scmp.ne.s32.totalorder %s172, %s173
      %p182 = scmp.eq.s32.totalorder %s29, 0
      %p183 = por %p181, %p182
      %p184 = scmp.ne.s32.totalorder %s172, %s173
      %p185 = scmp.eq.s32.totalorder %s30, 1
      %p186 = por %p184, %p185
      %p188 = scmp.ne.s32.totalorder %s173, %s187
      %p189 = scmp.eq.s32.totalorder %s30, 0
      %p190 = por %p188, %p189
      %s192 = sadd.s32 %s191, 1
      %p195 = scmp.eq.s32.totalorder %s24, 1
      %p196 = scmp.ne.s32.totalorder %s191, %s193
      %p197 = scmp.eq.s32.totalorder %s24, 0
      %p198 = por %p196, %p197
      %p199 = scmp.ne.s32.totalorder %s191, %s193
      %p200 = scmp.eq.s32.totalorder %s29, 1
      %p201 = por %p199, %p200
      %p202 = scmp.ne.s32.totalorder %s193, %s194
      %p203 = scmp.eq.s32.totalorder %s29, 0
      %p204 = por %p202, %p203
      %p205 = scmp.ne.s32.totalorder %s193, %s194
      %p206 = scmp.eq.s32.totalorder %s30, 1
      %p207 = por %p205, %p206
      %p209 = scmp.ne.s32.totalorder %s194, %s208
      %p210 = scmp.eq.s32.totalorder %s30, 0
      %p211 = por %p209, %p210
      %s213 = sadd.s32 %s212, 1
      %p216 = scmp.eq.s32.totalorder %s24, 1
      %p217 = scmp.ne.s32.totalorder %s212, %s214
      %p218 = scmp.eq.s32.totalorder %s24, 0
      %p219 = por %p217, %p218
      %p220 = scmp.ne.s32.totalorder %s212, %s214
      %p221 = scmp.eq.s32.totalorder %s29, 1
      %p222 = por %p220, %p221
      %p223 = scmp.ne.s32.totalorder %s214, %s215
      %p224 = scmp.eq.s32.totalorder %s29, 0
      %p225 = por %p223, %p224
      %p226 = scmp.ne.s32.totalorder %s214, %s215
      %p227 = scmp.eq.s32.totalorder %s30, 1
      %p228 = por %p226, %p227
      %p230 = scmp.ne.s32.totalorder %s215, %s229
      %p231 = scmp.eq.s32.totalorder %s30, 0
      %p232 = por %p230, %p231
      %s234 = sadd.s32 %s233, 1
      %p237 = scmp.eq.s32.totalorder %s24, 1
      %p238 = scmp.ne.s32.totalorder %s233, %s235
      %p239 = scmp.eq.s32.totalorder %s24, 0
      %p240 = por %p238, %p239
      %p241 = scmp.ne.s32.totalorder %s233, %s235
      %p242 = scmp.eq.s32.totalorder %s29, 1
      %p243 = por %p241, %p242
      %p244 = scmp.ne.s32.totalorder %s235, %s236
      %p245 = scmp.eq.s32.totalorder %s29, 0
      %p246 = por %p244, %p245
      %p247 = scmp.ne.s32.totalorder %s235, %s236
      %p248 = scmp.eq.s32.totalorder %s30, 1
      %p249 = por %p247, %p248
      %p251 = scmp.ne.s32.totalorder %s236, %s250
      %p252 = scmp.eq.s32.totalorder %s30, 0
      %p253 = por %p251, %p252
      %s254 = ssub.s32 %s31, %s43
      %s255 = ssub.s32 %s32, %s39
      %s256 = sor.u32 %s254, %s255
      %p257 = scmp.eq.s32.totalorder %s256, 0
      %s259 = sadd.s32 %s258, 1
      %s260 = scalar_select %p257, %s258, %s259
      %p263 = pneg %p257
      %p264 = scmp.eq.s32.totalorder %s24, 1
      %p265 = por %p263, %p264
      %p266 = scmp.ne.s32.totalorder %s258, %s261
      %p267 = scmp.eq.s32.totalorder %s24, 0
      %p268 = por %p266, %p267
      %p269 = scmp.ne.s32.totalorder %s258, %s261
      %p270 = scmp.eq.s32.totalorder %s29, 1
      %p271 = por %p269, %p270
      %p272 = scmp.ne.s32.totalorder %s261, %s262
      %p273 = scmp.eq.s32.totalorder %s29, 0
      %p274 = por %p272, %p273
      %p275 = scmp.ne.s32.totalorder %s261, %s262
      %p276 = scmp.eq.s32.totalorder %s30, 1
      %p277 = por %p275, %p276
      %p279 = scmp.ne.s32.totalorder %s262, %s278
      %p280 = scmp.eq.s32.totalorder %s30, 0
      %p281 = por %p279, %p280
      %s282 = ssub.s32 %s31, %s43
      %s283 = ssub.s32 %s32, %s39
      %s284 = sor.u32 %s282, %s283
      %p285 = scmp.eq.s32.totalorder %s284, 0
      %s287 = sadd.s32 %s286, 1
      %s288 = scalar_select %p285, %s286, %s287
      %p291 = pneg %p285
      %p292 = scmp.eq.s32.totalorder %s24, 1
      %p293 = por %p291, %p292
      %p294 = scmp.ne.s32.totalorder %s286, %s289
      %p295 = scmp.eq.s32.totalorder %s24, 0
      %p296 = por %p294, %p295
      %p297 = scmp.ne.s32.totalorder %s286, %s289
      %p298 = scmp.eq.s32.totalorder %s29, 1
      %p299 = por %p297, %p298
      %p300 = scmp.ne.s32.totalorder %s289, %s290
      %p301 = scmp.eq.s32.totalorder %s29, 0
      %p302 = por %p300, %p301
      %p303 = scmp.ne.s32.totalorder %s289, %s290
      %p304 = scmp.eq.s32.totalorder %s30, 1
      %p305 = por %p303, %p304
      %p307 = scmp.ne.s32.totalorder %s290, %s306
      %p308 = scmp.eq.s32.totalorder %s30, 0
      %p309 = por %p307, %p308
      %s310 = ssub.s32 %s31, %s43
      %s311 = ssub.s32 %s32, %s39
      %s312 = sor.u32 %s310, %s311
      %p313 = scmp.eq.s32.totalorder %s312, 0
      %s315 = sadd.s32 %s314, 1
      %s316 = scalar_select %p313, %s314, %s315
      %p319 = pneg %p313
      %p320 = scmp.eq.s32.totalorder %s24, 1
      %p321 = por %p319, %p320
      %p322 = scmp.ne.s32.totalorder %s314, %s317
      %p323 = scmp.eq.s32.totalorder %s24, 0
      %p324 = por %p322, %p323
      %p325 = scmp.ne.s32.totalorder %s314, %s317
      %p326 = scmp.eq.s32.totalorder %s29, 1
      %p327 = por %p325, %p326
      %p328 = scmp.ne.s32.totalorder %s317, %s318
      %p329 = scmp.eq.s32.totalorder %s29, 0
      %p330 = por %p328, %p329
      %p331 = scmp.ne.s32.totalorder %s317, %s318
      %p332 = scmp.eq.s32.totalorder %s30, 1
      %p333 = por %p331, %p332
      %p335 = scmp.ne.s32.totalorder %s318, %s334
      %p336 = scmp.eq.s32.totalorder %s30, 0
      %p337 = por %p335, %p336
      %p338 = scmp.le.s32.totalorder 1, %s24
      %p339 = scmp.lt.s32.totalorder %s24, 3
      %p340 = pnand %p338, %p339
      %p341 = pneg %p340
      // Predicated region
      $region9: #{tpu_custom_call.1} parent=5 // pred_check
        _
      $region10: #{tpu_custom_call.1} parent=5 // pred_check_branch
        %343 = sbr.rel (%p340) target = $region12
      $region11: #{tpu_custom_call.1} parent=5 // pred_region
        %s344 = ssub.s32 %s24, 1
        // Predicated region
        $region13: #{tpu_custom_call.1} parent=11 // pred_check
          %p345 = pneg %p141
        $region14: #{tpu_custom_call.1} parent=11 // pred_check_branch
          %347 = sbr.rel (%p345) target = $region16
        $region15: #{tpu_custom_call.1} parent=11 // pred_region
          _
        $region16: #{tpu_custom_call.1} parent=11 // pred_fallthru
          _
        // Predicated region
        $region17: #{tpu_custom_call.1} parent=11 // pred_check
          %p348 = pneg %p162
        $region18: #{tpu_custom_call.1} parent=11 // pred_check_branch
          %350 = sbr.rel (%p348) target = $region20
        $region19: #{tpu_custom_call.1} parent=11 // pred_region
          _
        $region20: #{tpu_custom_call.1} parent=11 // pred_fallthru
          _
        // Predicated region
        $region21: #{tpu_custom_call.1} parent=11 // pred_check
          %p351 = pneg %p183
        $region22: #{tpu_custom_call.1} parent=11 // pred_check_branch
          %353 = sbr.rel (%p351) target = $region24
        $region23: #{tpu_custom_call.1} parent=11 // pred_region
          _
        $region24: #{tpu_custom_call.1} parent=11 // pred_fallthru
          _
        // Predicated region
        $region25: #{tpu_custom_call.1} parent=11 // pred_check
          %p354 = pneg %p204
        $region26: #{tpu_custom_call.1} parent=11 // pred_check_branch
          %356 = sbr.rel (%p354) target = $region28
        $region27: #{tpu_custom_call.1} parent=11 // pred_region
          _
        $region28: #{tpu_custom_call.1} parent=11 // pred_fallthru
          _
        // Predicated region
        $region29: #{tpu_custom_call.1} parent=11 // pred_check
          %p357 = pneg %p225
        $region30: #{tpu_custom_call.1} parent=11 // pred_check_branch
          %359 = sbr.rel (%p357) target = $region32
        $region31: #{tpu_custom_call.1} parent=11 // pred_region
          _
        $region32: #{tpu_custom_call.1} parent=11 // pred_fallthru
          _
        // Predicated region
        $region33: #{tpu_custom_call.1} parent=11 // pred_check
          %p360 = pneg %p246
        $region34: #{tpu_custom_call.1} parent=11 // pred_check_branch
          %362 = sbr.rel (%p360) target = $region36
        $region35: #{tpu_custom_call.1} parent=11 // pred_region
          _
        $region36: #{tpu_custom_call.1} parent=11 // pred_fallthru
          _
      $region12: #{tpu_custom_call.1} parent=5 // pred_fallthru
        _
      %p363 = scmp.lt.s32.totalorder %s24, 2
      // Predicated region
      $region37: #{tpu_custom_call.1} parent=5 // pred_check
        %p364 = pneg %p363
      $region38: #{tpu_custom_call.1} parent=5 // pred_check_branch
        %366 = sbr.rel (%p364) target = $region40
      $region39: #{tpu_custom_call.1} parent=5 // pred_region
        // Predicated region
        $region41: #{tpu_custom_call.1} parent=39 // pred_check
          %p367 = pneg %p58
        $region42: #{tpu_custom_call.1} parent=39 // pred_check_branch
          %369 = sbr.rel (%p367) target = $region44
        $region43: #{tpu_custom_call.1} parent=39 // pred_region
          %p370 = scmp.lt.s32.totalorder %s31, 1
          %s371 = scalar_select %p370, %s31, 1
          %p372 = scmp.lt.s32.totalorder %s32, 0
          %s373 = scalar_select %p372, %s32, 0
          %s374 = sadd.s32 %s373, %s371
          %s375 = smul.addr %s374, 8
          %s376 = scalar_lea.vmem %s0, %s375
        $region44: #{tpu_custom_call.1} parent=39 // pred_fallthru
          _
        // Predicated region
        $region45: #{tpu_custom_call.1} parent=39 // pred_check
          %p377 = pneg %p86
        $region46: #{tpu_custom_call.1} parent=39 // pred_check_branch
          %379 = sbr.rel (%p377) target = $region48
        $region47: #{tpu_custom_call.1} parent=39 // pred_region
          %p380 = scmp.lt.s32.totalorder %s31, 1
          %s381 = scalar_select %p380, %s31, 1
          %p382 = scmp.lt.s32.totalorder %s32, 0
          %s383 = scalar_select %p382, %s32, 0
          %s384 = sadd.s32 %s383, %s381
          %s385 = smul.addr %s384, 8
          %s386 = scalar_lea.vmem %s1, %s385
        $region48: #{tpu_custom_call.1} parent=39 // pred_fallthru
          _
        // Predicated region
        $region49: #{tpu_custom_call.1} parent=39 // pred_check
          %p387 = pneg %p114
        $region50: #{tpu_custom_call.1} parent=39 // pred_check_branch
          %389 = sbr.rel (%p387) target = $region52
        $region51: #{tpu_custom_call.1} parent=39 // pred_region
          %p390 = scmp.lt.s32.totalorder %s31, 1
          %s391 = scalar_select %p390, %s31, 1
          %p392 = scmp.lt.s32.totalorder %s32, 0
          %s393 = scalar_select %p392, %s32, 0
          %s394 = sadd.s32 %s393, %s391
          %s395 = smul.addr %s394, 8
          %s396 = scalar_lea.vmem %s2, %s395
        $region52: #{tpu_custom_call.1} parent=39 // pred_fallthru
          _
      $region40: #{tpu_custom_call.1} parent=5 // pred_fallthru
        _
      %p397 = scmp.le.s32.totalorder 1, %s24
      %p398 = scmp.lt.s32.totalorder %s24, 3
      %p399 = pnand %p397, %p398
      %p400 = pneg %p399
      // Predicated region
      $region53: #{tpu_custom_call.1} parent=5 // pred_check
        _
      $region54: #{tpu_custom_call.1} parent=5 // pred_check_branch
        %402 = sbr.rel (%p399) target = $region56
      $region55: #{tpu_custom_call.1} parent=5 // pred_region
        %s403 = ssub.s32 %s24, 1
        %p404 = scmp.lt.s32.totalorder %s33, 1
        %s405 = scalar_select %p404, %s33, 1
        %p406 = scmp.lt.s32.totalorder %s34, 0
        %s407 = scalar_select %p406, %s34, 0
        %s408 = sadd.s32 %s407, %s405
        %s409 = smul.addr %s408, 8
        %s410 = scalar_lea.vmem %s0, %s409
        %p411 = pneg %p64
        %p412 = pneg %p61
        %p413 = scmp.lt.s32.totalorder %s33, 1
        %s414 = scalar_select %p413, %s33, 1
        %p415 = scmp.lt.s32.totalorder %s34, 0
        %s416 = scalar_select %p415, %s34, 0
        %s417 = sadd.s32 %s416, %s414
        %s418 = smul.addr %s417, 8
        %s419 = scalar_lea.vmem %s1, %s418
        %p420 = pneg %p92
        %p421 = pneg %p89
        %p422 = scmp.lt.s32.totalorder %s33, 1
        %s423 = scalar_select %p422, %s33, 1
        %p424 = scmp.lt.s32.totalorder %s34, 0
        %s425 = scalar_select %p424, %s34, 0
        %s426 = sadd.s32 %s425, %s423
        %s427 = smul.addr %s426, 8
        %s428 = scalar_lea.vmem %s2, %s427
        %p429 = pneg %p120
        %p430 = pneg %p117
        %p431 = pneg %p141
        %p432 = pneg %p138
        %p433 = pneg %p162
        %p434 = pneg %p159
        %p435 = pneg %p183
        %p436 = pneg %p180
        %p437 = pneg %p204
        %p438 = pneg %p201
        %p439 = pneg %p225
        %p440 = pneg %p222
        %p441 = pneg %p246
        %p442 = pneg %p243
        %p443 = pneg %p274
        %p444 = pneg %p271
        %s445 = sand.u32 %s261, 1
        %s446 = scalar_lea.sflag [#allocation3], %s445
        %s447 = sand.u32 %s261, 1
        %s448 = smul.addr %s447, 8
        %s449 = scalar_lea.vmem [#allocation2], %s448
        %p450 = pneg %p302
        %p451 = pneg %p299
        %s452 = sand.u32 %s29, 1
        %s453 = scalar_lea.sflag [#allocation5], %s452
        %s454 = sand.u32 %s289, 1
        %s455 = smul.addr %s454, 8
        %s456 = scalar_lea.vmem [#allocation4], %s455
        %p457 = pneg %p330
        %p458 = pneg %p327
        %s459 = sand.u32 %s29, 1
        %s460 = scalar_lea.sflag [#allocation5], %s459
        %s461 = sand.u32 %s317, 1
        %s462 = smul.addr %s461, 8
        %s463 = scalar_lea.vmem [#allocation6], %s462
        %p464 = scmp.lt.s32.totalorder %s33, 1
        %s465 = scalar_select %p464, %s33, 1
        %p466 = scmp.lt.s32.totalorder %s34, 0
        %s467 = scalar_select %p466, %s34, 0
        %s468 = sadd.s32 %s467, %s465
        %s469 = smul.addr %s468, 8
        %s470 = scalar_lea.vmem %s0, %s469
        %p471 = scmp.lt.s32.totalorder %s33, 1
        %s472 = scalar_select %p471, %s33, 1
        %p473 = scmp.lt.s32.totalorder %s34, 0
        %s474 = scalar_select %p473, %s34, 0
        %s475 = sadd.s32 %s474, %s472
        %s476 = smul.addr %s475, 8
        %s477 = scalar_lea.vmem %s1, %s476
        %p478 = scmp.lt.s32.totalorder %s33, 1
        %s479 = scalar_select %p478, %s33, 1
        %p480 = scmp.lt.s32.totalorder %s34, 0
        %s481 = scalar_select %p480, %s34, 0
        %s482 = sadd.s32 %s481, %s479
        %s483 = smul.addr %s482, 8
        %s484 = scalar_lea.vmem %s2, %s483
        %v485 = vld [vmem:[%s470] sm:$0xff]
        %v486 = vld [vmem:[%s3] sm:$0xff]
        %v487 = vld [vmem:[%s3 + $0x8] sm:$0xff]
        %v488 = vld [vmem:[%s3 + $0x10] sm:$0xff]
        %v489 = vld [vmem:[%s3 + $0x18] sm:$0xff]
        %v490 = vld [vmem:[%s4] sm:$0x1]
        %v492 = vlaneseq
        %v493 = vshrl.u32 %v492, 7
        %v494 = vsub.s32 0, %v493
        %v495 = vrot.slane %v490, %v494
        %vm497 = vcmask 261120
        %v499 = vsel %vm497, %v485, 0
        %501 = vmatprep.subr.mxu0 0.0
        %502 = vmatpush1.msra.mxu0 %v486
        %503 = vmatprep.subr.mxu0 0.0
        %504 = vmatpush1.msra.mxu0 %v487
        %505 = vmatprep.subr.mxu0 0.0
        %506 = vmatpush1.msra.mxu0 %v488
        %507 = vmatprep.subr.mxu0 0.0
        %508 = vmatpush1.msra.mxu0 %v489
        %509 = vmatprep.subr.mxu0 0.0
        %510 = vmatpush1.msra.mxu0 0.0
        %511 = vmatprep.subr.mxu0 0.0
        %512 = vmatpush1.msra.mxu0 0.0
        %513 = vmatprep.subr.mxu0 0.0
        %514 = vmatpush1.msra.mxu0 0.0
        %515 = vmatprep.subr.mxu0 0.0
        %516 = vmatpush1.msra.mxu0 0.0
        %517 = vmatprep.subr.mxu0 0.0
        %518 = vmatpush1.msra.mxu0 0.0
        %519 = vmatprep.subr.mxu0 0.0
        %520 = vmatpush1.msra.mxu0 0.0
        %521 = vmatprep.subr.mxu0 0.0
        %522 = vmatpush1.msra.mxu0 0.0
        %523 = vmatprep.subr.mxu0 0.0
        %524 = vmatpush1.msra.mxu0 0.0
        %525 = vmatprep.subr.mxu0 0.0
        %526 = vmatpush1.msra.mxu0 0.0
        %527 = vmatprep.subr.mxu0 0.0
        %528 = vmatpush1.msra.mxu0 0.0
        %529 = vmatprep.subr.mxu0 0.0
        %530 = vmatpush1.msra.mxu0 0.0
        %531 = vmatprep.subr.mxu0 0.0
        %532 = vmatpush1.msra.mxu0 0.0
        %533 = vmatprep.subr.mxu0 0.0
        %534 = vmatpush1.msra.mxu0 0.0
        %535 = vmatprep.subr.mxu0 0.0
        %536 = vmatpush1.msra.mxu0 0.0
        %537 = vmatprep.subr.mxu0 0.0
        %538 = vmatpush1.msra.mxu0 0.0
        %539 = vmatprep.subr.mxu0 0.0
        %540 = vmatpush1.msra.mxu0 0.0
        %541 = vmatprep.subr.mxu0 0.0
        %542 = vmatpush1.msra.mxu0 0.0
        %543 = vmatprep.subr.mxu0 0.0
        %544 = vmatpush1.msra.mxu0 0.0
        %545 = vmatprep.subr.mxu0 0.0
        %546 = vmatpush1.msra.mxu0 0.0
        %547 = vmatprep.subr.mxu0 0.0
        %548 = vmatpush1.msra.mxu0 0.0
        %549 = vmatprep.subr.mxu0 0.0
        %550 = vmatpush1.msra.mxu0 0.0
        %551 = vmatprep.subr.mxu0 0.0
        %552 = vmatpush1.msra.mxu0 0.0
        %553 = vmatprep.subr.mxu0 0.0
        %554 = vmatpush1.msra.mxu0 0.0
        %555 = vmatprep.subr.mxu0 0.0
        %556 = vmatpush1.msra.mxu0 0.0
        %557 = vmatprep.subr.mxu0 0.0
        %558 = vmatpush1.msra.mxu0 0.0
        %559 = vmatprep.subr.mxu0 0.0
        %560 = vmatpush1.msra.mxu0 0.0
        %561 = vmatprep.subr.mxu0 0.0
        %562 = vmatpush1.msra.mxu0 0.0
        %563 = vmatprep.subr.mxu0 0.0
        %564 = vmatpush1.msra.mxu0 0.0
        %565 = vmatprep.mubr.f32.mxu0 0.0
        %566 = vmatmul.mubr.f32.gmra.mrb[0].mxu0 %v499
        %v567 = vpop.f32.mrb[0].mxu0
        %v568 = vadd.f32 %v495, %v567
        %v569 = vpop.f32.mrb[0].mxu0
        %570 = vdwg.mxu0
        %v571 = vmul.f32 %v568, 0.25
        %vm572 = vcmask 130048
        %573 = vst.msk [vmem:[%s449] sm:$0xff] %vm572, %v571
        %v574 = vld [vmem:[%s477] sm:$0xff]
        %v575 = vld [vmem:[%s5] sm:$0xff]
        %v576 = vld [vmem:[%s5 + $0x8] sm:$0xff]
        %v577 = vld [vmem:[%s5 + $0x10] sm:$0xff]
        %v578 = vld [vmem:[%s5 + $0x18] sm:$0xff]
        %v579 = vld [vmem:[%s6] sm:$0x1]
        %v581 = vlaneseq
        %v582 = vshrl.u32 %v581, 7
        %v583 = vsub.s32 0, %v582
        %v584 = vrot.slane %v579, %v583
        %v587 = vsel %vm497, %v574, 0
        %589 = vmatprep.subr.mxu0 0.0
        %590 = vmatpush1.msra.mxu0 %v575
        %591 = vmatprep.subr.mxu0 0.0
        %592 = vmatpush1.msra.mxu0 %v576
        %593 = vmatprep.subr.mxu0 0.0
        %594 = vmatpush1.msra.mxu0 %v577
        %595 = vmatprep.subr.mxu0 0.0
        %596 = vmatpush1.msra.mxu0 %v578
        %597 = vmatprep.subr.mxu0 0.0
        %598 = vmatpush1.msra.mxu0 0.0
        %599 = vmatprep.subr.mxu0 0.0
        %600 = vmatpush1.msra.mxu0 0.0
        %601 = vmatprep.subr.mxu0 0.0
        %602 = vmatpush1.msra.mxu0 0.0
        %603 = vmatprep.subr.mxu0 0.0
        %604 = vmatpush1.msra.mxu0 0.0
        %605 = vmatprep.subr.mxu0 0.0
        %606 = vmatpush1.msra.mxu0 0.0
        %607 = vmatprep.subr.mxu0 0.0
        %608 = vmatpush1.msra.mxu0 0.0
        %609 = vmatprep.subr.mxu0 0.0
        %610 = vmatpush1.msra.mxu0 0.0
        %611 = vmatprep.subr.mxu0 0.0
        %612 = vmatpush1.msra.mxu0 0.0
        %613 = vmatprep.subr.mxu0 0.0
        %614 = vmatpush1.msra.mxu0 0.0
        %615 = vmatprep.subr.mxu0 0.0
        %616 = vmatpush1.msra.mxu0 0.0
        %617 = vmatprep.subr.mxu0 0.0
        %618 = vmatpush1.msra.mxu0 0.0
        %619 = vmatprep.subr.mxu0 0.0
        %620 = vmatpush1.msra.mxu0 0.0
        %621 = vmatprep.subr.mxu0 0.0
        %622 = vmatpush1.msra.mxu0 0.0
        %623 = vmatprep.subr.mxu0 0.0
        %624 = vmatpush1.msra.mxu0 0.0
        %625 = vmatprep.subr.mxu0 0.0
        %626 = vmatpush1.msra.mxu0 0.0
        %627 = vmatprep.subr.mxu0 0.0
        %628 = vmatpush1.msra.mxu0 0.0
        %629 = vmatprep.subr.mxu0 0.0
        %630 = vmatpush1.msra.mxu0 0.0
        %631 = vmatprep.subr.mxu0 0.0
        %632 = vmatpush1.msra.mxu0 0.0
        %633 = vmatprep.subr.mxu0 0.0
        %634 = vmatpush1.msra.mxu0 0.0
        %635 = vmatprep.subr.mxu0 0.0
        %636 = vmatpush1.msra.mxu0 0.0
        %637 = vmatprep.subr.mxu0 0.0
        %638 = vmatpush1.msra.mxu0 0.0
        %639 = vmatprep.subr.mxu0 0.0
        %640 = vmatpush1.msra.mxu0 0.0
        %641 = vmatprep.subr.mxu0 0.0
        %642 = vmatpush1.msra.mxu0 0.0
        %643 = vmatprep.subr.mxu0 0.0
        %644 = vmatpush1.msra.mxu0 0.0
        %645 = vmatprep.subr.mxu0 0.0
        %646 = vmatpush1.msra.mxu0 0.0
        %647 = vmatprep.subr.mxu0 0.0
        %648 = vmatpush1.msra.mxu0 0.0
        %649 = vmatprep.subr.mxu0 0.0
        %650 = vmatpush1.msra.mxu0 0.0
        %651 = vmatprep.subr.mxu0 0.0
        %652 = vmatpush1.msra.mxu0 0.0
        %653 = vmatprep.mubr.f32.mxu0 0.0
        %654 = vmatmul.mubr.f32.gmra.mrb[0].mxu0 %v587
        %v655 = vpop.f32.mrb[0].mxu0
        %v656 = vadd.f32 %v584, %v655
        %v657 = vpop.f32.mrb[0].mxu0
        %658 = vdwg.mxu0
        %659 = vst.msk [vmem:[%s456] sm:$0xff] %vm572, %v656
        %v660 = vld [vmem:[%s484] sm:$0xff]
        %v661 = vld [vmem:[%s7] sm:$0xff]
        %v662 = vld [vmem:[%s7 + $0x8] sm:$0xff]
        %v663 = vld [vmem:[%s7 + $0x10] sm:$0xff]
        %v664 = vld [vmem:[%s7 + $0x18] sm:$0xff]
        %v665 = vld [vmem:[%s8] sm:$0x1]
        %v667 = vlaneseq
        %v668 = vshrl.u32 %v667, 7
        %v669 = vsub.s32 0, %v668
        %v670 = vrot.slane %v665, %v669
        %v673 = vsel %vm497, %v660, 0
        %675 = vmatprep.subr.mxu0 0.0
        %676 = vmatpush1.msra.mxu0 %v661
        %677 = vmatprep.subr.mxu0 0.0
        %678 = vmatpush1.msra.mxu0 %v662
        %679 = vmatprep.subr.mxu0 0.0
        %680 = vmatpush1.msra.mxu0 %v663
        %681 = vmatprep.subr.mxu0 0.0
        %682 = vmatpush1.msra.mxu0 %v664
        %683 = vmatprep.subr.mxu0 0.0
        %684 = vmatpush1.msra.mxu0 0.0
        %685 = vmatprep.subr.mxu0 0.0
        %686 = vmatpush1.msra.mxu0 0.0
        %687 = vmatprep.subr.mxu0 0.0
        %688 = vmatpush1.msra.mxu0 0.0
        %689 = vmatprep.subr.mxu0 0.0
        %690 = vmatpush1.msra.mxu0 0.0
        %691 = vmatprep.subr.mxu0 0.0
        %692 = vmatpush1.msra.mxu0 0.0
        %693 = vmatprep.subr.mxu0 0.0
        %694 = vmatpush1.msra.mxu0 0.0
        %695 = vmatprep.subr.mxu0 0.0
        %696 = vmatpush1.msra.mxu0 0.0
        %697 = vmatprep.subr.mxu0 0.0
        %698 = vmatpush1.msra.mxu0 0.0
        %699 = vmatprep.subr.mxu0 0.0
        %700 = vmatpush1.msra.mxu0 0.0
        %701 = vmatprep.subr.mxu0 0.0
        %702 = vmatpush1.msra.mxu0 0.0
        %703 = vmatprep.subr.mxu0 0.0
        %704 = vmatpush1.msra.mxu0 0.0
        %705 = vmatprep.subr.mxu0 0.0
        %706 = vmatpush1.msra.mxu0 0.0
        %707 = vmatprep.subr.mxu0 0.0
        %708 = vmatpush1.msra.mxu0 0.0
        %709 = vmatprep.subr.mxu0 0.0
        %710 = vmatpush1.msra.mxu0 0.0
        %711 = vmatprep.subr.mxu0 0.0
        %712 = vmatpush1.msra.mxu0 0.0
        %713 = vmatprep.subr.mxu0 0.0
        %714 = vmatpush1.msra.mxu0 0.0
        %715 = vmatprep.subr.mxu0 0.0
        %716 = vmatpush1.msra.mxu0 0.0
        %717 = vmatprep.subr.mxu0 0.0
        %718 = vmatpush1.msra.mxu0 0.0
        %719 = vmatprep.subr.mxu0 0.0
        %720 = vmatpush1.msra.mxu0 0.0
        %721 = vmatprep.subr.mxu0 0.0
        %722 = vmatpush1.msra.mxu0 0.0
        %723 = vmatprep.subr.mxu0 0.0
        %724 = vmatpush1.msra.mxu0 0.0
        %725 = vmatprep.subr.mxu0 0.0
        %726 = vmatpush1.msra.mxu0 0.0
        %727 = vmatprep.subr.mxu0 0.0
        %728 = vmatpush1.msra.mxu0 0.0
        %729 = vmatprep.subr.mxu0 0.0
        %730 = vmatpush1.msra.mxu0 0.0
        %731 = vmatprep.subr.mxu0 0.0
        %732 = vmatpush1.msra.mxu0 0.0
        %733 = vmatprep.subr.mxu0 0.0
        %734 = vmatpush1.msra.mxu0 0.0
        %735 = vmatprep.subr.mxu0 0.0
        %736 = vmatpush1.msra.mxu0 0.0
        %737 = vmatprep.subr.mxu0 0.0
        %738 = vmatpush1.msra.mxu0 0.0
        %739 = vmatprep.mubr.f32.mxu0 0.0
        %740 = vmatmul.mubr.f32.gmra.mrb[0].mxu0 %v673
        %v741 = vpop.f32.mrb[0].mxu0
        %v742 = vadd.f32 %v670, %v741
        %v743 = vpop.f32.mrb[0].mxu0
        %744 = vdwg.mxu0
        %745 = vst.msk [vmem:[%s463] sm:$0xff] %vm572, %v742
        %s746 = sand.u32 %s261, 1
        %s747 = scalar_lea.sflag [#allocation3], %s746
        %s748 = sand.u32 %s261, 1
        %s749 = smul.addr %s748, 8
        %s750 = scalar_lea.vmem [#allocation2], %s749
        %s751 = sand.u32 %s29, 1
        %s752 = scalar_lea.sflag [#allocation5], %s751
        %s753 = sand.u32 %s289, 1
        %s754 = smul.addr %s753, 8
        %s755 = scalar_lea.vmem [#allocation4], %s754
        %s756 = sand.u32 %s29, 1
        %s757 = scalar_lea.sflag [#allocation5], %s756
        %s758 = sand.u32 %s317, 1
        %s759 = smul.addr %s758, 8
        %s760 = scalar_lea.vmem [#allocation6], %s759
        // Predicated region
        $region57: #{tpu_custom_call.1} parent=55 // pred_check
          %p761 = pneg %p271
        $region58: #{tpu_custom_call.1} parent=55 // pred_check_branch
          %763 = sbr.rel (%p761) target = $region60
        $region59: #{tpu_custom_call.1} parent=55 // pred_region
          %s765 = ssub.s32 128, 128
          %766 = vsyncadd %s747, %s765
          %s767 = sadd.s32 %s34, %s33
          %s768 = smul.addr %s767, 128
          %s769 = scalar_lea.hbm %s9, %s768
          %s771 = sshll.u32 %s750, 4
          %s772 = int_to_ptr.vmem [resolvable:$true] %s771
          %774 = dma.vmem_to_hbm [thread:$0]  %s772, 128, %s769, %s747
        $region60: #{tpu_custom_call.1} parent=55 // pred_fallthru
          _
        // Predicated region
        $region61: #{tpu_custom_call.1} parent=55 // pred_check
          %p775 = pneg %p299
        $region62: #{tpu_custom_call.1} parent=55 // pred_check_branch
          %777 = sbr.rel (%p775) target = $region64
        $region63: #{tpu_custom_call.1} parent=55 // pred_region
          %s779 = ssub.s32 128, 128
          %780 = vsyncadd %s752, %s779
          %s781 = sadd.s32 %s34, %s33
          %s782 = smul.addr %s781, 128
          %s783 = scalar_lea.hbm %s10, %s782
          %s785 = sshll.u32 %s755, 4
          %s786 = int_to_ptr.vmem [resolvable:$true] %s785
          %788 = dma.vmem_to_hbm [thread:$0]  %s786, 128, %s783, %s752
        $region64: #{tpu_custom_call.1} parent=55 // pred_fallthru
          _
        // Predicated region
        $region65: #{tpu_custom_call.1} parent=55 // pred_check
          %p789 = pneg %p327
        $region66: #{tpu_custom_call.1} parent=55 // pred_check_branch
          %791 = sbr.rel (%p789) target = $region68
        $region67: #{tpu_custom_call.1} parent=55 // pred_region
          %s793 = ssub.s32 128, 128
          %794 = vsyncadd %s757, %s793
          %s795 = sadd.s32 %s34, %s33
          %s796 = smul.addr %s795, 128
          %s797 = scalar_lea.hbm %s11, %s796
          %s799 = sshll.u32 %s760, 4
          %s800 = int_to_ptr.vmem [resolvable:$true] %s799
          %802 = dma.vmem_to_hbm [thread:$0]  %s800, 128, %s797, %s757
        $region68: #{tpu_custom_call.1} parent=55 // pred_fallthru
          _
      $region56: #{tpu_custom_call.1} parent=5 // pred_fallthru
        _
      %p803 = scmp.le.s32.totalorder 2, %s24
      // Predicated region
      $region69: #{tpu_custom_call.1} parent=5 // pred_check
        %p804 = pneg %p803
      $region70: #{tpu_custom_call.1} parent=5 // pred_check_branch
        %806 = sbr.rel (%p804) target = $region72
      $region71: #{tpu_custom_call.1} parent=5 // pred_region
        %s807 = ssub.s32 %s24, 2
        // Predicated region
        $region73: #{tpu_custom_call.1} parent=71 // pred_check
          %p808 = pneg %p277
        $region74: #{tpu_custom_call.1} parent=71 // pred_check_branch
          %810 = sbr.rel (%p808) target = $region76
        $region75: #{tpu_custom_call.1} parent=71 // pred_region
          %s811 = sand.u32 %s262, 1
          %s812 = scalar_lea.sflag [#allocation3], %s811
          %s813 = sand.u32 %s262, 1
          %s814 = smul.addr %s813, 8
          %s815 = scalar_lea.vmem [#allocation2], %s814
          %816 = dma.done %s812, 128
        $region76: #{tpu_custom_call.1} parent=71 // pred_fallthru
          _
        // Predicated region
        $region77: #{tpu_custom_call.1} parent=71 // pred_check
          %p817 = pneg %p305
        $region78: #{tpu_custom_call.1} parent=71 // pred_check_branch
          %819 = sbr.rel (%p817) target = $region80
        $region79: #{tpu_custom_call.1} parent=71 // pred_region
          %s820 = sand.u32 %s30, 1
          %s821 = scalar_lea.sflag [#allocation5], %s820
          %s822 = sand.u32 %s290, 1
          %s823 = smul.addr %s822, 8
          %s824 = scalar_lea.vmem [#allocation4], %s823
          %825 = dma.done %s821, 128
        $region80: #{tpu_custom_call.1} parent=71 // pred_fallthru
          _
        // Predicated region
        $region81: #{tpu_custom_call.1} parent=71 // pred_check
          %p826 = pneg %p333
        $region82: #{tpu_custom_call.1} parent=71 // pred_check_branch
          %828 = sbr.rel (%p826) target = $region84
        $region83: #{tpu_custom_call.1} parent=71 // pred_region
          %s829 = sand.u32 %s30, 1
          %s830 = scalar_lea.sflag [#allocation5], %s829
          %s831 = sand.u32 %s318, 1
          %s832 = smul.addr %s831, 8
          %s833 = scalar_lea.vmem [#allocation6], %s832
          %834 = dma.done %s830, 128
        $region84: #{tpu_custom_call.1} parent=71 // pred_fallthru
          _
      $region72: #{tpu_custom_call.1} parent=5 // pred_fallthru
        _
    $region6: #{tpu_custom_call.1} parent=1 // loop_footer
      %s28 = sadd.s32 1, %s24
    $region7: #{tpu_custom_call.1} parent=1 // loop_footer_branch
      %23 = sbr.rel target = $region3
    $region8: #{tpu_custom_call.1} parent=1 // loop_exit
      _
    %835 = vsyncpa [#allocation3], 1
    %s836 = scalar_lea.sflag [#allocation3], 1
    %837 = vsyncpa %s836, 1
    %838 = vsyncpa [#allocation5], 1
    %s839 = scalar_lea.sflag [#allocation5], 1
    %840 = vsyncpa %s839, 1

</llo_original>
